<compile_context>
chip_gen: v7x
topology: tpu7x:2x2x1
jax: 0.10.0
libtpu: 0.0.40
codegen_flags: <defaults>
</compile_context>

<pallas_src>
import jax
import jax.numpy as jnp
from jax.experimental import pallas as pl
from jax.experimental.pallas import tpu as pltpu

LANE = 128
_VMEM_LIMIT = 32 * 1024 * 1024        # scoped-VMEM request (safe on v5e/v6e/v7x)
_VMEM_TILE_BUDGET = 24 * 1024 * 1024  # working budget used to size the batch tile


def _round_up(n, m):
    return ((n + m - 1) // m) * m


def _mxu_row_multiple():
    """v5e MXU is 4x128^2 (128-row tiles saturate it); v6e/v7x are 2x256^2."""
    try:
        kind = jax.devices()[0].device_kind.lower()
    except Exception:
        return 256
    if "v5 lite" in kind or "v5e" in kind or "v5lite" in kind:
        return 128
    return 256


def _pick_tb(B, K0, H1p, H2p, C):
    """Largest useful batch tile: MXU-row aligned, >=2 grid steps when the batch
    is big enough (keeps both v7x TensorCores busy), bounded by a VMEM budget."""
    row_mult = _mxu_row_multiple()
    # Resident (ideally single-buffered) bf16 weights + f32 biases.
    fixed = 2 * (K0 * H1p + H1p * H2p + H2p * C) + 4 * (H1p + H2p + C)
    # Per-row bytes: double-buffered f32 x and out, bf16 h1/h2 intermediates,
    # plus one f32 matmul result before the bf16 cast.
    per_row = 8 * K0 + 8 * C + 2 * (H1p + H2p) + 4 * max(H1p, H2p)
    avail = max(_VMEM_TILE_BUDGET - fixed, row_mult * per_row)
    cap = max((avail // per_row) // row_mult * row_mult, row_mult)
    cap = min(cap, 1024)
    if B <= 32:
        return _round_up(max(B, 8), 16)        # one tiny tile (demo-sized batches)
    if B <= cap:
        return _round_up(pl.cdiv(B, 2), 16)    # two balanced tiles -> 2 v7x TCs busy
    return cap                                  # VMEM-budgeted, row_mult-aligned


def _mlp_kernel(x_ref, w1_ref, b1_ref, w2_ref, b2_ref, w3_ref, b3_ref, o_ref):
    # fc1 + (dropout = identity in eval) + relu; bf16 MXU, f32 accumulate.
    x = x_ref[...].astype(w1_ref.dtype)
    h = jnp.dot(x, w1_ref[...], preferred_element_type=jnp.float32)
    h = jnp.maximum(h + b1_ref[...], 0.0).astype(w2_ref.dtype)   # bf16 between layers
    # fc2 + (dropout = identity) + relu
    h = jnp.dot(h, w2_ref[...], preferred_element_type=jnp.float32)
    h = jnp.maximum(h + b2_ref[...], 0.0).astype(w3_ref.dtype)
    # fc3 (logits, no activation)
    out = jnp.dot(h, w3_ref[...], preferred_element_type=jnp.float32)
    o_ref[...] = (out + b3_ref[...]).astype(o_ref.dtype)


def _pad2d(a, rows, cols):
    r, c = a.shape
    if (r, c) == (rows, cols):
        return a
    return jnp.pad(a, ((0, rows - r), (0, cols - c)))


def classification_forward(x, params, *, tb=None, compute_dtype=jnp.bfloat16):
    """x: [B, input_size] float32.  params: dict of w1,b1,w2,b2,w3,b3
    (weights stored [in, out], biases [1, out]).  Returns [B, num_classes] f32."""
    w1, b1 = params["w1"], params["b1"]
    w2, b2 = params["w2"], params["b2"]
    w3, b3 = params["w3"], params["b3"]

    B, K0 = x.shape
    H1, H2, C = w1.shape[1], w2.shape[1], w3.shape[1]

    # Pad only the hidden dims to lane-dense multiples of 128. Weights are tiny,
    # VMEM-resident and zero-padding is exact (zero cols/rows, bias 0, ReLU(0)=0).
    # x (K0) and the logits (C) stay unpadded so the kernel streams exactly the
    # bytes it needs from/to HBM.
    H1p = _round_up(H1, LANE)
    H2p = _round_up(H2, LANE)

    w1p = _pad2d(w1, K0, H1p).astype(compute_dtype)
    w2p = _pad2d(w2, H1p, H2p).astype(compute_dtype)
    w3p = _pad2d(w3, H2p, C).astype(compute_dtype)
    b1p = _pad2d(b1, 1, H1p).astype(jnp.float32)
    b2p = _pad2d(b2, 1, H2p).astype(jnp.float32)
    b3p = b3.astype(jnp.float32)

    if tb is None:
        tb = _pick_tb(B, K0, H1p, H2p, C)
    tb = max(8, _round_up(tb, 8))
    grid_steps = pl.cdiv(B, tb)

    cost = pl.CostEstimate(
        flops=2 * B * (K0 * H1p + H1p * H2p + H2p * C),
        transcendentals=0,
        bytes_accessed=(x.size * x.dtype.itemsize
                        + (w1p.size + w2p.size + w3p.size) * 2
                        + (b1p.size + b2p.size + b3p.size) * 4
                        + B * C * 4),
    )

    def _run(weight_pipeline_mode):
        def const_spec(shape):
            idx = lambda i: (0,) * len(shape)
            if weight_pipeline_mode is None:
                return pl.BlockSpec(shape, idx)
            return pl.BlockSpec(shape, idx, pipeline_mode=weight_pipeline_mode)

        return pl.pallas_call(
            _mlp_kernel,
            out_shape=jax.ShapeDtypeStruct((B, C), jnp.float32),
            grid=(grid_steps,),
            in_specs=[
                pl.BlockSpec((tb, K0), lambda i: (i, 0)),   # x: streamed over batch
                const_spec(w1p.shape), const_spec(b1p.shape),  # weights: resident
                const_spec(w2p.shape), const_spec(b2p.shape),
                const_spec(w3p.shape), const_spec(b3p.shape),
            ],
            out_specs=pl.BlockSpec((tb, C), lambda i: (i, 0)),
            compiler_params=pltpu.CompilerParams(
                dimension_semantics=("parallel",),
                vmem_limit_bytes=_VMEM_LIMIT),
            cost_estimate=cost,
        )(x, w1p, b1p, w2p, b2p, w3p, b3p)

    buffered = getattr(pl, "Buffered", None)
    if buffered is not None:
        try:
            # Constant index_maps -> single-buffer the resident weights/biases so
            # they occupy 1x VMEM (matters on v7x's 64 MiB at large hidden sizes).
            return _run(buffered(1))
        except Exception:
            pass
    return _run(None)


def init_params(key, input_size, hidden1, hidden2, num_classes):
    """Deterministic synthetic parameters (PyTorch nn.Linear shapes, stored
    transposed as [in, out])."""
    ks = jax.random.split(key, 6)
    scale = 0.1
    return {
        "w1": scale * jax.random.normal(ks[0], (input_size, hidden1), jnp.float32),
        "b1": scale * jax.random.normal(ks[1], (1, hidden1), jnp.float32),
        "w2": scale * jax.random.normal(ks[2], (hidden1, hidden2), jnp.float32),
        "b2": scale * jax.random.normal(ks[3], (1, hidden2), jnp.float32),
        "w3": scale * jax.random.normal(ks[4], (hidden2, num_classes), jnp.float32),
        "b3": scale * jax.random.normal(ks[5], (1, num_classes), jnp.float32),
    }


def _reference_forward(x, p, compute_dtype=jnp.bfloat16):
    # Same numerics as the kernel: bf16 operands, f32 accumulation/epilogue.
    cast = lambda a: a.astype(compute_dtype)
    h1 = jnp.maximum(
        jnp.dot(cast(x), cast(p["w1"]), preferred_element_type=jnp.float32)
        + p["b1"], 0.0)
    h2 = jnp.maximum(
        jnp.dot(cast(h1), cast(p["w2"]), preferred_element_type=jnp.float32)
        + p["b2"], 0.0)
    return jnp.dot(cast(h2), cast(p["w3"]),
                   preferred_element_type=jnp.float32) + p["b3"]


if __name__ == "__main__":
    # Small shapes consistent with the module's constructor:
    # classification(input_size=32, hidden_size1=64, hidden_size2=32,
    #                num_layers=1, num_classes=4), batch=8.
    B, input_size, hidden1, hidden2, num_classes = 8, 32, 64, 32, 4

    key = jax.random.PRNGKey(0)
    kx, kp = jax.random.split(key)
    x = jax.random.normal(kx, (B, input_size), jnp.float32)
    params = init_params(kp, input_size, hidden1, hidden2, num_classes)

    out = classification_forward(x, params)
    out = jax.block_until_ready(out)

    ref = _reference_forward(x, params)
    assert out.shape == (B, num_classes)
    assert jnp.allclose(out, ref, atol=2e-3, rtol=2e-3), "mismatch vs reference"

    print("KERNEL_OK")
</pallas_src>

<mosaic_0001>
module attributes {stable_mosaic.version = 11 : i64} {
  func.func @_mlp_kernel(%arg0: i32, %arg1: memref<16x32xf32, #tpu.memory_space<vmem>>, %arg2: memref<32x128xbf16, #tpu.memory_space<vmem>>, %arg3: memref<1x128xf32, #tpu.memory_space<vmem>>, %arg4: memref<128x128xbf16, #tpu.memory_space<vmem>>, %arg5: memref<1x128xf32, #tpu.memory_space<vmem>>, %arg6: memref<128x4xbf16, #tpu.memory_space<vmem>>, %arg7: memref<1x4xf32, #tpu.memory_space<vmem>>, %arg8: memref<16x4xf32, #tpu.memory_space<vmem>>) attributes {dimension_semantics = [#tpu.dimension_semantics<parallel>], iteration_bounds = array<i64: 1>, scalar_prefetch = 0 : i64, scratch_operands = 0 : i64, tpu.core_type = #tpu.core_type<tc>, window_params = [{transform_indices = @transform_0, window_bounds = array<i64: 16, 32>}, {pipeline_mode = #tpu.pipeline_mode<synchronous>, transform_indices = @transform_1, window_bounds = array<i64: 32, 128>}, {pipeline_mode = #tpu.pipeline_mode<synchronous>, transform_indices = @transform_2, window_bounds = array<i64: 1, 128>}, {pipeline_mode = #tpu.pipeline_mode<synchronous>, transform_indices = @transform_3, window_bounds = array<i64: 128, 128>}, {pipeline_mode = #tpu.pipeline_mode<synchronous>, transform_indices = @transform_4, window_bounds = array<i64: 1, 128>}, {pipeline_mode = #tpu.pipeline_mode<synchronous>, transform_indices = @transform_5, window_bounds = array<i64: 128, 4>}, {pipeline_mode = #tpu.pipeline_mode<synchronous>, transform_indices = @transform_6, window_bounds = array<i64: 1, 4>}, {transform_indices = @transform_7, window_bounds = array<i64: 16, 4>}]} {
    %c0 = arith.constant 0 : index
    %c0_0 = arith.constant 0 : index
    %0 = vector.load %arg1[%c0, %c0_0] : memref<16x32xf32, #tpu.memory_space<vmem>>, vector<16x32xf32>
    %1 = arith.truncf %0 : vector<16x32xf32> to vector<16x32xbf16>
    %c0_1 = arith.constant 0 : index
    %c0_2 = arith.constant 0 : index
    %2 = vector.load %arg2[%c0_1, %c0_2] : memref<32x128xbf16, #tpu.memory_space<vmem>>, vector<32x128xbf16>
    %cst = arith.constant dense<0.000000e+00> : vector<16x128xf32>
    %3 = tpu.matmul %1, %2, %cst {dimension_numbers = #tpu.dot_dimension_numbers<[1], [0], [0], [1], [0, 0, 1, 1], [], []>} : vector<16x32xbf16>, vector<32x128xbf16>, vector<16x128xf32> -> vector<16x128xf32>
    %c0_3 = arith.constant 0 : index
    %c0_4 = arith.constant 0 : index
    %4 = vector.load %arg3[%c0_3, %c0_4] : memref<1x128xf32, #tpu.memory_space<vmem>>, vector<1x128xf32>
    %5 = vector.broadcast %4 : vector<1x128xf32> to vector<16x128xf32>
    %6 = arith.addf %3, %5 : vector<16x128xf32>
    %cst_5 = arith.constant 0.000000e+00 : f32
    %7 = vector.broadcast %cst_5 : f32 to vector<16x128xf32>
    %8 = arith.maximumf %6, %7 : vector<16x128xf32>
    %9 = arith.truncf %8 : vector<16x128xf32> to vector<16x128xbf16>
    %c0_6 = arith.constant 0 : index
    %c0_7 = arith.constant 0 : index
    %10 = vector.load %arg4[%c0_6, %c0_7] : memref<128x128xbf16, #tpu.memory_space<vmem>>, vector<128x128xbf16>
    %cst_8 = arith.constant dense<0.000000e+00> : vector<16x128xf32>
    %11 = tpu.matmul %9, %10, %cst_8 {dimension_numbers = #tpu.dot_dimension_numbers<[1], [0], [0], [1], [0, 0, 1, 1], [], []>} : vector<16x128xbf16>, vector<128x128xbf16>, vector<16x128xf32> -> vector<16x128xf32>
    %c0_9 = arith.constant 0 : index
    %c0_10 = arith.constant 0 : index
    %12 = vector.load %arg5[%c0_9, %c0_10] : memref<1x128xf32, #tpu.memory_space<vmem>>, vector<1x128xf32>
    %13 = vector.broadcast %12 : vector<1x128xf32> to vector<16x128xf32>
    %14 = arith.addf %11, %13 : vector<16x128xf32>
    %cst_11 = arith.constant 0.000000e+00 : f32
    %15 = vector.broadcast %cst_11 : f32 to vector<16x128xf32>
    %16 = arith.maximumf %14, %15 : vector<16x128xf32>
    %17 = arith.truncf %16 : vector<16x128xf32> to vector<16x128xbf16>
    %c0_12 = arith.constant 0 : index
    %c0_13 = arith.constant 0 : index
    %18 = vector.load %arg6[%c0_12, %c0_13] : memref<128x4xbf16, #tpu.memory_space<vmem>>, vector<128x4xbf16>
    %cst_14 = arith.constant dense<0.000000e+00> : vector<16x4xf32>
    %19 = tpu.matmul %17, %18, %cst_14 {dimension_numbers = #tpu.dot_dimension_numbers<[1], [0], [0], [1], [0, 0, 1, 1], [], []>} : vector<16x128xbf16>, vector<128x4xbf16>, vector<16x4xf32> -> vector<16x4xf32>
    %c0_15 = arith.constant 0 : index
    %c0_16 = arith.constant 0 : index
    %20 = vector.load %arg7[%c0_15, %c0_16] : memref<1x4xf32, #tpu.memory_space<vmem>>, vector<1x4xf32>
    %21 = vector.broadcast %20 : vector<1x4xf32> to vector<16x4xf32>
    %22 = arith.addf %19, %21 : vector<16x4xf32>
    %c0_17 = arith.constant 0 : index
    %c0_18 = arith.constant 0 : index
    %23 = vector.load %arg8[%c0_17, %c0_18] : memref<16x4xf32, #tpu.memory_space<vmem>>, vector<16x4xf32>
    tpu.vector_store %arg8[%c0_17, %c0_18], %22 {strides = array<i32>} : memref<16x4xf32, #tpu.memory_space<vmem>>, vector<16x4xf32>,
    return
  }
  func.func @transform_0(%arg0: i32) -> (i32, i32) {
    %c0_i32 = arith.constant 0 : i32
    %c0_i32_0 = arith.constant 0 : i32
    return %arg0, %c0_i32 : i32, i32
  }
  func.func @transform_1(%arg0: i32) -> (i32, i32) {
    %c0_i32 = arith.constant 0 : i32
    %c0_i32_0 = arith.constant 0 : i32
    %c0_i32_1 = arith.constant 0 : i32
    return %c0_i32, %c0_i32_0 : i32, i32
  }
  func.func @transform_2(%arg0: i32) -> (i32, i32) {
    %c0_i32 = arith.constant 0 : i32
    %c0_i32_0 = arith.constant 0 : i32
    %c0_i32_1 = arith.constant 0 : i32
    return %c0_i32, %c0_i32_0 : i32, i32
  }
  func.func @transform_3(%arg0: i32) -> (i32, i32) {
    %c0_i32 = arith.constant 0 : i32
    %c0_i32_0 = arith.constant 0 : i32
    %c0_i32_1 = arith.constant 0 : i32
    return %c0_i32, %c0_i32_0 : i32, i32
  }
  func.func @transform_4(%arg0: i32) -> (i32, i32) {
    %c0_i32 = arith.constant 0 : i32
    %c0_i32_0 = arith.constant 0 : i32
    %c0_i32_1 = arith.constant 0 : i32
    return %c0_i32, %c0_i32_0 : i32, i32
  }
  func.func @transform_5(%arg0: i32) -> (i32, i32) {
    %c0_i32 = arith.constant 0 : i32
    %c0_i32_0 = arith.constant 0 : i32
    %c0_i32_1 = arith.constant 0 : i32
    return %c0_i32, %c0_i32_0 : i32, i32
  }
  func.func @transform_6(%arg0: i32) -> (i32, i32) {
    %c0_i32 = arith.constant 0 : i32
    %c0_i32_0 = arith.constant 0 : i32
    %c0_i32_1 = arith.constant 0 : i32
    return %c0_i32, %c0_i32_0 : i32, i32
  }
  func.func @transform_7(%arg0: i32) -> (i32, i32) {
    %c0_i32 = arith.constant 0 : i32
    %c0_i32_0 = arith.constant 0 : i32
    return %arg0, %c0_i32 : i32, i32
  }
}

module attributes {stable_mosaic.version = 11 : i64} {
  func.func @_mlp_kernel(%arg0: i32, %arg1: memref<16x32xf32, #tpu.memory_space<vmem>>, %arg2: memref<32x128xbf16, #tpu.memory_space<vmem>>, %arg3: memref<1x128xf32, #tpu.memory_space<vmem>>, %arg4: memref<128x128xbf16, #tpu.memory_space<vmem>>, %arg5: memref<1x128xf32, #tpu.memory_space<vmem>>, %arg6: memref<128x4xbf16, #tpu.memory_space<vmem>>, %arg7: memref<1x4xf32, #tpu.memory_space<vmem>>, %arg8: memref<16x4xf32, #tpu.memory_space<vmem>>) attributes {dimension_semantics = [#tpu.dimension_semantics<parallel>], iteration_bounds = array<i64: 1>, scalar_prefetch = 0 : i64, scratch_operands = 0 : i64, tpu.core_type = #tpu.core_type<tc>, window_params = [{transform_indices = @transform_0, window_bounds = array<i64: 16, 32>}, {pipeline_mode = #tpu.pipeline_mode<synchronous>, transform_indices = @transform_1, window_bounds = array<i64: 32, 128>}, {pipeline_mode = #tpu.pipeline_mode<synchronous>, transform_indices = @transform_2, window_bounds = array<i64: 1, 128>}, {pipeline_mode = #tpu.pipeline_mode<synchronous>, transform_indices = @transform_3, window_bounds = array<i64: 128, 128>}, {pipeline_mode = #tpu.pipeline_mode<synchronous>, transform_indices = @transform_4, window_bounds = array<i64: 1, 128>}, {pipeline_mode = #tpu.pipeline_mode<synchronous>, transform_indices = @transform_5, window_bounds = array<i64: 128, 4>}, {pipeline_mode = #tpu.pipeline_mode<synchronous>, transform_indices = @transform_6, window_bounds = array<i64: 1, 4>}, {transform_indices = @transform_7, window_bounds = array<i64: 16, 4>}]} {
    %c0 = arith.constant 0 : index
    %c0_0 = arith.constant 0 : index
    %0 = vector.load %arg1[%c0, %c0_0] : memref<16x32xf32, #tpu.memory_space<vmem>>, vector<16x32xf32>
    %1 = arith.truncf %0 : vector<16x32xf32> to vector<16x32xbf16>
    %c0_1 = arith.constant 0 : index
    %c0_2 = arith.constant 0 : index
    %2 = vector.load %arg2[%c0_1, %c0_2] : memref<32x128xbf16, #tpu.memory_space<vmem>>, vector<32x128xbf16>
    %cst = arith.constant dense<0.000000e+00> : vector<16x128xf32>
    %3 = tpu.matmul %1, %2, %cst {dimension_numbers = #tpu.dot_dimension_numbers<[1], [0], [0], [1], [0, 0, 1, 1], [], []>} : vector<16x32xbf16>, vector<32x128xbf16>, vector<16x128xf32> -> vector<16x128xf32>
    %c0_3 = arith.constant 0 : index
    %c0_4 = arith.constant 0 : index
    %4 = vector.load %arg3[%c0_3, %c0_4] : memref<1x128xf32, #tpu.memory_space<vmem>>, vector<1x128xf32>
    %5 = vector.broadcast %4 : vector<1x128xf32> to vector<16x128xf32>
    %6 = arith.addf %3, %5 : vector<16x128xf32>
    %cst_5 = arith.constant 0.000000e+00 : f32
    %7 = vector.broadcast %cst_5 : f32 to vector<16x128xf32>
    %8 = arith.maximumf %6, %7 : vector<16x128xf32>
    %9 = arith.truncf %8 : vector<16x128xf32> to vector<16x128xbf16>
    %c0_6 = arith.constant 0 : index
    %c0_7 = arith.constant 0 : index
    %10 = vector.load %arg4[%c0_6, %c0_7] : memref<128x128xbf16, #tpu.memory_space<vmem>>, vector<128x128xbf16>
    %cst_8 = arith.constant dense<0.000000e+00> : vector<16x128xf32>
    %11 = tpu.matmul %9, %10, %cst_8 {dimension_numbers = #tpu.dot_dimension_numbers<[1], [0], [0], [1], [0, 0, 1, 1], [], []>} : vector<16x128xbf16>, vector<128x128xbf16>, vector<16x128xf32> -> vector<16x128xf32>
    %c0_9 = arith.constant 0 : index
    %c0_10 = arith.constant 0 : index
    %12 = vector.load %arg5[%c0_9, %c0_10] : memref<1x128xf32, #tpu.memory_space<vmem>>, vector<1x128xf32>
    %13 = vector.broadcast %12 : vector<1x128xf32> to vector<16x128xf32>
    %14 = arith.addf %11, %13 : vector<16x128xf32>
    %cst_11 = arith.constant 0.000000e+00 : f32
    %15 = vector.broadcast %cst_11 : f32 to vector<16x128xf32>
    %16 = arith.maximumf %14, %15 : vector<16x128xf32>
    %17 = arith.truncf %16 : vector<16x128xf32> to vector<16x128xbf16>
    %c0_12 = arith.constant 0 : index
    %c0_13 = arith.constant 0 : index
    %18 = vector.load %arg6[%c0_12, %c0_13] : memref<128x4xbf16, #tpu.memory_space<vmem>>, vector<128x4xbf16>
    %cst_14 = arith.constant dense<0.000000e+00> : vector<16x4xf32>
    %19 = tpu.matmul %17, %18, %cst_14 {dimension_numbers = #tpu.dot_dimension_numbers<[1], [0], [0], [1], [0, 0, 1, 1], [], []>} : vector<16x128xbf16>, vector<128x4xbf16>, vector<16x4xf32> -> vector<16x4xf32>
    %c0_15 = arith.constant 0 : index
    %c0_16 = arith.constant 0 : index
    %20 = vector.load %arg7[%c0_15, %c0_16] : memref<1x4xf32, #tpu.memory_space<vmem>>, vector<1x4xf32>
    %21 = vector.broadcast %20 : vector<1x4xf32> to vector<16x4xf32>
    %22 = arith.addf %19, %21 : vector<16x4xf32>
    %c0_17 = arith.constant 0 : index
    %c0_18 = arith.constant 0 : index
    %23 = vector.load %arg8[%c0_17, %c0_18] : memref<16x4xf32, #tpu.memory_space<vmem>>, vector<16x4xf32>
    tpu.vector_store %arg8[%c0_17, %c0_18], %22 {strides = array<i32>} : memref<16x4xf32, #tpu.memory_space<vmem>>, vector<16x4xf32>,
    return
  }
  func.func @transform_0(%arg0: i32) -> (i32, i32) {
    %c0_i32 = arith.constant 0 : i32
    %c0_i32_0 = arith.constant 0 : i32
    return %arg0, %c0_i32 : i32, i32
  }
  func.func @transform_1(%arg0: i32) -> (i32, i32) {
    %c0_i32 = arith.constant 0 : i32
    %c0_i32_0 = arith.constant 0 : i32
    %c0_i32_1 = arith.constant 0 : i32
    return %c0_i32, %c0_i32_0 : i32, i32
  }
  func.func @transform_2(%arg0: i32) -> (i32, i32) {
    %c0_i32 = arith.constant 0 : i32
    %c0_i32_0 = arith.constant 0 : i32
    %c0_i32_1 = arith.constant 0 : i32
    return %c0_i32, %c0_i32_0 : i32, i32
  }
  func.func @transform_3(%arg0: i32) -> (i32, i32) {
    %c0_i32 = arith.constant 0 : i32
    %c0_i32_0 = arith.constant 0 : i32
    %c0_i32_1 = arith.constant 0 : i32
    return %c0_i32, %c0_i32_0 : i32, i32
  }
  func.func @transform_4(%arg0: i32) -> (i32, i32) {
    %c0_i32 = arith.constant 0 : i32
    %c0_i32_0 = arith.constant 0 : i32
    %c0_i32_1 = arith.constant 0 : i32
    return %c0_i32, %c0_i32_0 : i32, i32
  }
  func.func @transform_5(%arg0: i32) -> (i32, i32) {
    %c0_i32 = arith.constant 0 : i32
    %c0_i32_0 = arith.constant 0 : i32
    %c0_i32_1 = arith.constant 0 : i32
    return %c0_i32, %c0_i32_0 : i32, i32
  }
  func.func @transform_6(%arg0: i32) -> (i32, i32) {
    %c0_i32 = arith.constant 0 : i32
    %c0_i32_0 = arith.constant 0 : i32
    %c0_i32_1 = arith.constant 0 : i32
    return %c0_i32, %c0_i32_0 : i32, i32
  }
  func.func @transform_7(%arg0: i32) -> (i32, i32) {
    %c0_i32 = arith.constant 0 : i32
    %c0_i32_0 = arith.constant 0 : i32
    return %arg0, %c0_i32 : i32, i32
  }
}

</mosaic_0001>

<llo_original>
// kernel: tpu_custom_call.1
$region0: #{tpu_custom_call.1}
  #allocation0 [shape = 'u32[]', space=smem, size = 0x4, offset = 0x4, fixed_abs, tag = 'smem constant byte address 0x4 - core index']
  #allocation1 [shape = 'u32[144,128]{1,0:T(1,128)}', space=vmem, size = 0x12000, scoped, tag = 'internal scratch']
  %s0 = inlined_call_operand.vmem [shape: f32[8,32], index: 0, kind: input, shape index: {}]
  %s1 = inlined_call_operand.hbm [shape: bf16[32,128], index: 1, kind: input, shape index: {}]
  %s2 = inlined_call_operand.vmem [shape: f32[1,128], index: 2, kind: input, shape index: {}]
  %s3 = inlined_call_operand.vmem [shape: bf16[128,128], index: 3, kind: input, shape index: {}]
  %s4 = inlined_call_operand.vmem [shape: f32[1,128], index: 4, kind: input, shape index: {}]
  %s5 = inlined_call_operand.vmem [shape: bf16[128,4], index: 5, kind: input, shape index: {}]
  %s6 = inlined_call_operand.vmem [shape: f32[1,4], index: 6, kind: input, shape index: {}]
  %s7 = inlined_call_operand.vmem [shape: f32[8,4], index: 7, kind: output, shape index: {}]
  %s8 = sld [smem:[#allocation0]]
  $region76: #{tpu_custom_call.1} parent=0
    _
  %s10 = ssub.s32 1, %s8
  %s11 = scalar_select 0, %s10, %s8
  $region1: #{tpu_custom_call.1} parent=0
    #allocation2 [shape = 'u8[8192]{0}', space=vmem, size = 0x2000, scoped, tag = 'input window, operand 1, single buffered']
    #allocation3 [shape = 's32[1]{0}', space=sflag, size = 0x4, scoped, tag = 'scoped memory for tpu_custom_call.1']
    #allocation4 [shape = 'u8[8192]{0}', space=vmem, size = 0x2000, scoped, tag = 'output window, operand 0, single buffered']
    %12 = vsyncpa [#allocation3], 0
    // Predicated region
    $region2: #{tpu_custom_call.1} parent=1 // pred_check
      _
    $region3: #{tpu_custom_call.1} parent=1 // pred_check_branch
      %14 = sbr.rel (0) target = $region5
    $region4: #{tpu_custom_call.1} parent=1 // pred_region
      _
    $region5: #{tpu_custom_call.1} parent=1 // pred_fallthru
      _
    // Predicated region
    $region6: #{tpu_custom_call.1} parent=1 // pred_check
      _
    $region7: #{tpu_custom_call.1} parent=1 // pred_check_branch
      %16 = sbr.rel (0) target = $region9
    $region8: #{tpu_custom_call.1} parent=1 // pred_region
      %s18 = ssub.s32 256, 256
      %19 = vsyncadd [#allocation3], %s18
      %s20 = sshll.u32 [#allocation2], 4
      %s21 = int_to_ptr.vmem [resolvable:$true] %s20
      %26 = dma.hbm_to_vmem [thread:$0]  %s1, 256, %s21, [#allocation3], 64, 64, 4
    $region9: #{tpu_custom_call.1} parent=1 // pred_fallthru
      _
    // Predicated region
    $region10: #{tpu_custom_call.1} parent=1 // pred_check
      _
    $region11: #{tpu_custom_call.1} parent=1 // pred_check_branch
      %28 = sbr.rel (0) target = $region13
    $region12: #{tpu_custom_call.1} parent=1 // pred_region
      _
    $region13: #{tpu_custom_call.1} parent=1 // pred_fallthru
      _
    // Predicated region
    $region14: #{tpu_custom_call.1} parent=1 // pred_check
      _
    $region15: #{tpu_custom_call.1} parent=1 // pred_check_branch
      %30 = sbr.rel (0) target = $region17
    $region16: #{tpu_custom_call.1} parent=1 // pred_region
      _
    $region17: #{tpu_custom_call.1} parent=1 // pred_fallthru
      _
    // Predicated region
    $region18: #{tpu_custom_call.1} parent=1 // pred_check
      _
    $region19: #{tpu_custom_call.1} parent=1 // pred_check_branch
      %32 = sbr.rel (0) target = $region21
    $region20: #{tpu_custom_call.1} parent=1 // pred_region
      _
    $region21: #{tpu_custom_call.1} parent=1 // pred_fallthru
      _
    // Predicated region
    $region22: #{tpu_custom_call.1} parent=1 // pred_check
      _
    $region23: #{tpu_custom_call.1} parent=1 // pred_check_branch
      %34 = sbr.rel (0) target = $region25
    $region24: #{tpu_custom_call.1} parent=1 // pred_region
      _
    $region25: #{tpu_custom_call.1} parent=1 // pred_fallthru
      _
    // Predicated region
    $region26: #{tpu_custom_call.1} parent=1 // pred_check
      _
    $region27: #{tpu_custom_call.1} parent=1 // pred_check_branch
      %36 = sbr.rel (0) target = $region29
    $region28: #{tpu_custom_call.1} parent=1 // pred_region
      _
    $region29: #{tpu_custom_call.1} parent=1 // pred_fallthru
      _
    // Predicated region
    $region30: #{tpu_custom_call.1} parent=1 // pred_check
      _
    $region31: #{tpu_custom_call.1} parent=1 // pred_check_branch
      %38 = sbr.rel (0) target = $region33
    $region32: #{tpu_custom_call.1} parent=1 // pred_region
      %39 = dma.done [#allocation3], 256
    $region33: #{tpu_custom_call.1} parent=1 // pred_fallthru
      _
    %v41 = vld [vmem:[%s0] sm:$0xff]
    %v42 = vld [vmem:[%s0 + $0x8] sm:$0xff]
    %v43 = vpack.c.bf16 %v42, %v41
    %v44 = vld [vmem:[#allocation2] sm:$0xf]
    %v45 = vld [vmem:[#allocation2 + $0x4] sm:$0xf]
    %v46 = vld [vmem:[#allocation2 + $0x8] sm:$0xf]
    %v47 = vld [vmem:[#allocation2 + $0xc] sm:$0xf]
    %v48 = vld [vmem:[%s2] sm:$0x1]
    %v50 = vlaneseq
    %v51 = vshrl.u32 %v50, 7
    %v52 = vsub.s32 0, %v51
    %v53 = vrot.slane %v48, %v52
    %v59 = vunpack.c.l.b16 %v44
    %v60 = vunpack.c.l.b16 %v45
    %v61 = vunpack.c.l.b16 %v46
    %v62 = vunpack.c.l.b16 %v47
    %v63 = vpack.c.b16 %v60, %v59
    %v64 = vpack.c.b16 %v62, %v61
    %vm67 = vcmask 261120
    %v69 = vsel %vm67, %v43, 0
    %71 = vmatprep.subr.bf16.mxu0 0
    %72 = vmatpush1.bf16.msra.mxu0 %v63
    %73 = vmatprep.subr.bf16.mxu0 0
    %74 = vmatpush1.bf16.msra.mxu0 %v64
    %75 = vmatprep.subr.bf16.mxu0 0
    %76 = vmatpush1.bf16.msra.mxu0 0
    %77 = vmatprep.subr.bf16.mxu0 0
    %78 = vmatpush1.bf16.msra.mxu0 0
    %79 = vmatprep.subr.bf16.mxu0 0
    %80 = vmatpush1.bf16.msra.mxu0 0
    %81 = vmatprep.subr.bf16.mxu0 0
    %82 = vmatpush1.bf16.msra.mxu0 0
    %83 = vmatprep.subr.bf16.mxu0 0
    %84 = vmatpush1.bf16.msra.mxu0 0
    %85 = vmatprep.subr.bf16.mxu0 0
    %86 = vmatpush1.bf16.msra.mxu0 0
    %87 = vmatprep.subr.bf16.mxu0 0
    %88 = vmatpush1.bf16.msra.mxu0 0
    %89 = vmatprep.subr.bf16.mxu0 0
    %90 = vmatpush1.bf16.msra.mxu0 0
    %91 = vmatprep.subr.bf16.mxu0 0
    %92 = vmatpush1.bf16.msra.mxu0 0
    %93 = vmatprep.subr.bf16.mxu0 0
    %94 = vmatpush1.bf16.msra.mxu0 0
    %95 = vmatprep.subr.bf16.mxu0 0
    %96 = vmatpush1.bf16.msra.mxu0 0
    %97 = vmatprep.subr.bf16.mxu0 0
    %98 = vmatpush1.bf16.msra.mxu0 0
    %99 = vmatprep.subr.bf16.mxu0 0
    %100 = vmatpush1.bf16.msra.mxu0 0
    %101 = vmatprep.subr.bf16.mxu0 0
    %102 = vmatpush1.bf16.msra.mxu0 0
    %103 = vmatprep.mubr.bf16.mxu0 0
    %104 = vmatmul.mubr.bf16.gmra.mrb[0].mxu0 %v69
    %v105 = vpop.f32.mrb[0].mxu0
    %v106 = vadd.f32 %v53, %v105
    %v107 = vpop.f32.mrb[0].mxu0
    %v108 = vpop.f32.mrb[0].mxu0
    %v109 = vadd.f32 %v53, %v108
    %v110 = vpop.f32.mrb[0].mxu0
    %111 = vdwg.mxu0
    %v112 = vmax.f32 %v106, 0.0
    %v113 = vmax.f32 %v109, 0.0
    %v114 = vpack.c.bf16 %v113, %v112
    %v115 = vld [vmem:[%s3] sm:$0xf]
    %v116 = vld [vmem:[%s3 + $0x4] sm:$0xf]
    %v117 = vld [vmem:[%s3 + $0x8] sm:$0xf]
    %v118 = vld [vmem:[%s3 + $0xc] sm:$0xf]
    %v119 = vld [vmem:[%s3 + $0x10] sm:$0xf]
    %v120 = vld [vmem:[%s3 + $0x14] sm:$0xf]
    %v121 = vld [vmem:[%s3 + $0x18] sm:$0xf]
    %v122 = vld [vmem:[%s3 + $0x1c] sm:$0xf]
    %v123 = vld [vmem:[%s3 + $0x20] sm:$0xf]
    %v124 = vld [vmem:[%s3 + $0x24] sm:$0xf]
    %v125 = vld [vmem:[%s3 + $0x28] sm:$0xf]
    %v126 = vld [vmem:[%s3 + $0x2c] sm:$0xf]
    %v127 = vld [vmem:[%s3 + $0x30] sm:$0xf]
    %v128 = vld [vmem:[%s3 + $0x34] sm:$0xf]
    %v129 = vld [vmem:[%s3 + $0x38] sm:$0xf]
    %v130 = vld [vmem:[%s3 + $0x3c] sm:$0xf]
    %v131 = vld [vmem:[%s4] sm:$0x1]
    %v133 = vlaneseq
    %v134 = vshrl.u32 %v133, 7
    %v135 = vsub.s32 0, %v134
    %v136 = vrot.slane %v131, %v135
    %v154 = vunpack.c.l.b16 %v115
    %v155 = vunpack.c.l.b16 %v116
    %v156 = vunpack.c.l.b16 %v117
    %v157 = vunpack.c.l.b16 %v118
    %v158 = vunpack.c.l.b16 %v119
    %v159 = vunpack.c.l.b16 %v120
    %v160 = vunpack.c.l.b16 %v121
    %v161 = vunpack.c.l.b16 %v122
    %v162 = vunpack.c.l.b16 %v123
    %v163 = vunpack.c.l.b16 %v124
    %v164 = vunpack.c.l.b16 %v125
    %v165 = vunpack.c.l.b16 %v126
    %v166 = vunpack.c.l.b16 %v127
    %v167 = vunpack.c.l.b16 %v128
    %v168 = vunpack.c.l.b16 %v129
    %v169 = vunpack.c.l.b16 %v130
    %v170 = vpack.c.b16 %v155, %v154
    %v171 = vpack.c.b16 %v157, %v156
    %v172 = vpack.c.b16 %v159, %v158
    %v173 = vpack.c.b16 %v161, %v160
    %v174 = vpack.c.b16 %v163, %v162
    %v175 = vpack.c.b16 %v165, %v164
    %v176 = vpack.c.b16 %v167, %v166
    %v177 = vpack.c.b16 %v169, %v168
    %186 = vmatprep.subr.bf16.mxu0 0
    %187 = vmatpush1.bf16.msra.mxu0 %v170
    %188 = vmatprep.subr.bf16.mxu0 0
    %189 = vmatpush1.bf16.msra.mxu0 %v171
    %190 = vmatprep.subr.bf16.mxu0 0
    %191 = vmatpush1.bf16.msra.mxu0 %v172
    %192 = vmatprep.subr.bf16.mxu0 0
    %193 = vmatpush1.bf16.msra.mxu0 %v173
    %194 = vmatprep.subr.bf16.mxu0 0
    %195 = vmatpush1.bf16.msra.mxu0 %v174
    %196 = vmatprep.subr.bf16.mxu0 0
    %197 = vmatpush1.bf16.msra.mxu0 %v175
    %198 = vmatprep.subr.bf16.mxu0 0
    %199 = vmatpush1.bf16.msra.mxu0 %v176
    %200 = vmatprep.subr.bf16.mxu0 0
    %201 = vmatpush1.bf16.msra.mxu0 %v177
    %202 = vmatprep.subr.bf16.mxu0 0
    %203 = vmatpush1.bf16.msra.mxu0 0
    %204 = vmatprep.subr.bf16.mxu0 0
    %205 = vmatpush1.bf16.msra.mxu0 0
    %206 = vmatprep.subr.bf16.mxu0 0
    %207 = vmatpush1.bf16.msra.mxu0 0
    %208 = vmatprep.subr.bf16.mxu0 0
    %209 = vmatpush1.bf16.msra.mxu0 0
    %210 = vmatprep.subr.bf16.mxu0 0
    %211 = vmatpush1.bf16.msra.mxu0 0
    %212 = vmatprep.subr.bf16.mxu0 0
    %213 = vmatpush1.bf16.msra.mxu0 0
    %214 = vmatprep.subr.bf16.mxu0 0
    %215 = vmatpush1.bf16.msra.mxu0 0
    %216 = vmatprep.subr.bf16.mxu0 0
    %217 = vmatpush1.bf16.msra.mxu0 0
    %218 = vmatprep.mubr.bf16.mxu0 0
    %219 = vmatmul.mubr.bf16.gmra.mrb[0].mxu0 %v114
    %v220 = vpop.f32.mrb[0].mxu0
    %v221 = vadd.f32 %v136, %v220
    %v222 = vpop.f32.mrb[0].mxu0
    %v223 = vpop.f32.mrb[0].mxu0
    %v224 = vadd.f32 %v136, %v223
    %v225 = vpop.f32.mrb[0].mxu0
    %226 = vdwg.mxu0
    %v227 = vmax.f32 %v221, 0.0
    %v228 = vmax.f32 %v224, 0.0
    %v229 = vpack.c.bf16 %v228, %v227
    %v230 = vld [vmem:[%s5] sm:$0xf]
    %v231 = vld [vmem:[%s5 + $0x4] sm:$0xf]
    %v232 = vld [vmem:[%s5 + $0x8] sm:$0xf]
    %v233 = vld [vmem:[%s5 + $0xc] sm:$0xf]
    %v234 = vld [vmem:[%s5 + $0x10] sm:$0xf]
    %v235 = vld [vmem:[%s5 + $0x14] sm:$0xf]
    %v236 = vld [vmem:[%s5 + $0x18] sm:$0xf]
    %v237 = vld [vmem:[%s5 + $0x1c] sm:$0xf]
    %v238 = vld [vmem:[%s5 + $0x20] sm:$0xf]
    %v239 = vld [vmem:[%s5 + $0x24] sm:$0xf]
    %v240 = vld [vmem:[%s5 + $0x28] sm:$0xf]
    %v241 = vld [vmem:[%s5 + $0x2c] sm:$0xf]
    %v242 = vld [vmem:[%s5 + $0x30] sm:$0xf]
    %v243 = vld [vmem:[%s5 + $0x34] sm:$0xf]
    %v244 = vld [vmem:[%s5 + $0x38] sm:$0xf]
    %v245 = vld [vmem:[%s5 + $0x3c] sm:$0xf]
    %v246 = vld [vmem:[%s6] sm:$0x1]
    %v248 = vlaneseq
    %v249 = vshrl.u32 %v248, 7
    %v250 = vsub.s32 0, %v249
    %v251 = vrot.slane %v246, %v250
    %v269 = vunpack.c.l.b16 %v230
    %v270 = vunpack.c.l.b16 %v231
    %v271 = vunpack.c.l.b16 %v232
    %v272 = vunpack.c.l.b16 %v233
    %v273 = vunpack.c.l.b16 %v234
    %v274 = vunpack.c.l.b16 %v235
    %v275 = vunpack.c.l.b16 %v236
    %v276 = vunpack.c.l.b16 %v237
    %v277 = vunpack.c.l.b16 %v238
    %v278 = vunpack.c.l.b16 %v239
    %v279 = vunpack.c.l.b16 %v240
    %v280 = vunpack.c.l.b16 %v241
    %v281 = vunpack.c.l.b16 %v242
    %v282 = vunpack.c.l.b16 %v243
    %v283 = vunpack.c.l.b16 %v244
    %v284 = vunpack.c.l.b16 %v245
    %v285 = vpack.c.b16 %v270, %v269
    %v286 = vpack.c.b16 %v272, %v271
    %v287 = vpack.c.b16 %v274, %v273
    %v288 = vpack.c.b16 %v276, %v275
    %v289 = vpack.c.b16 %v278, %v277
    %v290 = vpack.c.b16 %v280, %v279
    %v291 = vpack.c.b16 %v282, %v281
    %v292 = vpack.c.b16 %v284, %v283
    %301 = vmatprep.subr.bf16.mxu0 0
    %302 = vmatpush1.bf16.msra.mxu0 %v285
    %303 = vmatprep.subr.bf16.mxu0 0
    %304 = vmatpush1.bf16.msra.mxu0 %v286
    %305 = vmatprep.subr.bf16.mxu0 0
    %306 = vmatpush1.bf16.msra.mxu0 %v287
    %307 = vmatprep.subr.bf16.mxu0 0
    %308 = vmatpush1.bf16.msra.mxu0 %v288
    %309 = vmatprep.subr.bf16.mxu0 0
    %310 = vmatpush1.bf16.msra.mxu0 %v289
    %311 = vmatprep.subr.bf16.mxu0 0
    %312 = vmatpush1.bf16.msra.mxu0 %v290
    %313 = vmatprep.subr.bf16.mxu0 0
    %314 = vmatpush1.bf16.msra.mxu0 %v291
    %315 = vmatprep.subr.bf16.mxu0 0
    %316 = vmatpush1.bf16.msra.mxu0 %v292
    %317 = vmatprep.subr.bf16.mxu0 0
    %318 = vmatpush1.bf16.msra.mxu0 0
    %319 = vmatprep.subr.bf16.mxu0 0
    %320 = vmatpush1.bf16.msra.mxu0 0
    %321 = vmatprep.subr.bf16.mxu0 0
    %322 = vmatpush1.bf16.msra.mxu0 0
    %323 = vmatprep.subr.bf16.mxu0 0
    %324 = vmatpush1.bf16.msra.mxu0 0
    %325 = vmatprep.subr.bf16.mxu0 0
    %326 = vmatpush1.bf16.msra.mxu0 0
    %327 = vmatprep.subr.bf16.mxu0 0
    %328 = vmatpush1.bf16.msra.mxu0 0
    %329 = vmatprep.subr.bf16.mxu0 0
    %330 = vmatpush1.bf16.msra.mxu0 0
    %331 = vmatprep.subr.bf16.mxu0 0
    %332 = vmatpush1.bf16.msra.mxu0 0
    %333 = vmatprep.mubr.bf16.mxu0 0
    %334 = vmatmul.mubr.bf16.gmra.mrb[0].mxu0 %v229
    %v335 = vpop.f32.mrb[0].mxu0
    %v336 = vadd.f32 %v251, %v335
    %v337 = vpop.f32.mrb[0].mxu0
    %v338 = vpop.f32.mrb[0].mxu0
    %v339 = vadd.f32 %v251, %v338
    %v340 = vpop.f32.mrb[0].mxu0
    %341 = vdwg.mxu0
    %vm342 = vcmask 31744
    %343 = vst.msk [vmem:[#allocation4] sm:$0xff] %vm342, %v336
    %344 = vst.msk [vmem:[#allocation4 + $0x8] sm:$0xff] %vm342, %v339
    // Predicated region
    $region34: #{tpu_custom_call.1} parent=1 // pred_check
      _
    $region35: #{tpu_custom_call.1} parent=1 // pred_check_branch
      %346 = sbr.rel (0) target = $region37
    $region36: #{tpu_custom_call.1} parent=1 // pred_region
      // Predicated region
      $region38: #{tpu_custom_call.1} parent=36 // pred_check
        _
      $region39: #{tpu_custom_call.1} parent=36 // pred_check_branch
        %348 = sbr.rel (0) target = $region41
      $region40: #{tpu_custom_call.1} parent=36 // pred_region
        // Predicated region
        $region42: #{tpu_custom_call.1} parent=40 // pred_check
          _
        $region43: #{tpu_custom_call.1} parent=40 // pred_check_branch
          %350 = sbr.rel (0) target = $region45
        $region44: #{tpu_custom_call.1} parent=40 // pred_region
          // Predicated region
          $region57: #{tpu_custom_call.1} parent=44 // pred_check
            _
          $region58: #{tpu_custom_call.1} parent=44 // pred_check_branch
            %365 = sbr.rel (0) target = $region60
          $region59: #{tpu_custom_call.1} parent=44 // pred_region
            loop: start=0, step=1, limit=1
            $region61: #{tpu_custom_call.1} parent=59 // loop_pre_header
              _
            $region62: #{tpu_custom_call.1} parent=59 // loop_header
              %s367 = sphi 0, %s371
              %p368 = scmp.ge.s32.totalorder %s367, 1
              %s372 = sphi [#allocation4], [#allocation4]
              %s373 = sphi %s7, %s7
            $region63: #{tpu_custom_call.1} parent=59 // loop_header_branch
              %370 = sbr.rel (%p368) target = $region67
            $region64: #{tpu_custom_call.1} parent=59 // loop_body
              %v374 = vld [vmem:[%s372] sm:$0xff]
              %375 = vst [vmem:[%s373] sm:$0xff] %v374
            $region65: #{tpu_custom_call.1} parent=59 // loop_footer
              %s371 = sadd.s32 1, %s367
            $region66: #{tpu_custom_call.1} parent=59 // loop_footer_branch
              %366 = sbr.rel target = $region62
            $region67: #{tpu_custom_call.1} parent=59 // loop_exit
              _
          $region60: #{tpu_custom_call.1} parent=44 // pred_fallthru
            _
          // Predicated region
          $region68: #{tpu_custom_call.1} parent=44 // pred_check
            _
          $region69: #{tpu_custom_call.1} parent=44 // pred_check_branch
            %377 = sbr.rel target = $region71
          $region70: #{tpu_custom_call.1} parent=44 // pred_region
            _
          $region71: #{tpu_custom_call.1} parent=44 // pred_fallthru
            _
        $region45: #{tpu_custom_call.1} parent=40 // pred_fallthru
          _
        // Predicated region
        $region46: #{tpu_custom_call.1} parent=40 // pred_check
          _
        $region47: #{tpu_custom_call.1} parent=40 // pred_check_branch
          %352 = sbr.rel target = $region49
        $region48: #{tpu_custom_call.1} parent=40 // pred_region
          loop: start=0, step=1, limit=1
          $region50: #{tpu_custom_call.1} parent=48 // loop_pre_header
            _
          $region51: #{tpu_custom_call.1} parent=48 // loop_header
            %s355 = sphi 0, %s359
            %p356 = scmp.ge.s32.totalorder %s355, 1
            %s360 = sphi [#allocation4], [#allocation4]
            %s361 = sphi %s7, %s7
          $region52: #{tpu_custom_call.1} parent=48 // loop_header_branch
            %358 = sbr.rel (%p356) target = $region56
          $region53: #{tpu_custom_call.1} parent=48 // loop_body
            %v362 = vld [vmem:[%s360] sm:$0xff]
            %363 = vst [vmem:[%s361] sm:$0xff] %v362
          $region54: #{tpu_custom_call.1} parent=48 // loop_footer
            %s359 = sadd.s32 1, %s355
          $region55: #{tpu_custom_call.1} parent=48 // loop_footer_branch
            %354 = sbr.rel target = $region51
          $region56: #{tpu_custom_call.1} parent=48 // loop_exit
            _
        $region49: #{tpu_custom_call.1} parent=40 // pred_fallthru
          _
      $region41: #{tpu_custom_call.1} parent=36 // pred_fallthru
        _
      %378 = vnop
    $region37: #{tpu_custom_call.1} parent=1 // pred_fallthru
      _
    // Predicated region
    $region72: #{tpu_custom_call.1} parent=1 // pred_check
      _
    $region73: #{tpu_custom_call.1} parent=1 // pred_check_branch
      %380 = sbr.rel (0) target = $region75
    $region74: #{tpu_custom_call.1} parent=1 // pred_region
      _
    $region75: #{tpu_custom_call.1} parent=1 // pred_fallthru
      _
    %381 = vsyncpa [#allocation3], 1

// kernel: tpu_custom_call.1
$region0: #{tpu_custom_call.1}
  #allocation0 [shape = 'u32[]', space=smem, size = 0x4, offset = 0x4, fixed_abs, tag = 'smem constant byte address 0x4 - core index']
  #allocation1 [shape = 'u32[144,128]{1,0:T(1,128)}', space=vmem, size = 0x12000, scoped, tag = 'internal scratch']
  %s0 = inlined_call_operand.vmem [shape: f32[8,32], index: 0, kind: input, shape index: {}]
  %s1 = inlined_call_operand.hbm [shape: bf16[32,128], index: 1, kind: input, shape index: {}]
  %s2 = inlined_call_operand.vmem [shape: f32[1,128], index: 2, kind: input, shape index: {}]
  %s3 = inlined_call_operand.vmem [shape: bf16[128,128], index: 3, kind: input, shape index: {}]
  %s4 = inlined_call_operand.vmem [shape: f32[1,128], index: 4, kind: input, shape index: {}]
  %s5 = inlined_call_operand.vmem [shape: bf16[128,4], index: 5, kind: input, shape index: {}]
  %s6 = inlined_call_operand.vmem [shape: f32[1,4], index: 6, kind: input, shape index: {}]
  %s7 = inlined_call_operand.vmem [shape: f32[8,4], index: 7, kind: output, shape index: {}]
  %s8 = sld [smem:[#allocation0]]
  $region76: #{tpu_custom_call.1} parent=0
    _
  %s10 = ssub.s32 1, %s8
  %s11 = scalar_select 0, %s10, %s8
  $region1: #{tpu_custom_call.1} parent=0
    #allocation2 [shape = 'u8[8192]{0}', space=vmem, size = 0x2000, scoped, tag = 'input window, operand 1, single buffered']
    #allocation3 [shape = 's32[1]{0}', space=sflag, size = 0x4, scoped, tag = 'scoped memory for tpu_custom_call.1']
    #allocation4 [shape = 'u8[8192]{0}', space=vmem, size = 0x2000, scoped, tag = 'output window, operand 0, single buffered']
    %12 = vsyncpa [#allocation3], 0
    // Predicated region
    $region2: #{tpu_custom_call.1} parent=1 // pred_check
      _
    $region3: #{tpu_custom_call.1} parent=1 // pred_check_branch
      %14 = sbr.rel (0) target = $region5
    $region4: #{tpu_custom_call.1} parent=1 // pred_region
      _
    $region5: #{tpu_custom_call.1} parent=1 // pred_fallthru
      _
    // Predicated region
    $region6: #{tpu_custom_call.1} parent=1 // pred_check
      _
    $region7: #{tpu_custom_call.1} parent=1 // pred_check_branch
      %16 = sbr.rel (0) target = $region9
    $region8: #{tpu_custom_call.1} parent=1 // pred_region
      %s18 = ssub.s32 256, 256
      %19 = vsyncadd [#allocation3], %s18
      %s20 = sshll.u32 [#allocation2], 4
      %s21 = int_to_ptr.vmem [resolvable:$true] %s20
      %26 = dma.hbm_to_vmem [thread:$0]  %s1, 256, %s21, [#allocation3], 64, 64, 4
    $region9: #{tpu_custom_call.1} parent=1 // pred_fallthru
      _
    // Predicated region
    $region10: #{tpu_custom_call.1} parent=1 // pred_check
      _
    $region11: #{tpu_custom_call.1} parent=1 // pred_check_branch
      %28 = sbr.rel (0) target = $region13
    $region12: #{tpu_custom_call.1} parent=1 // pred_region
      _
    $region13: #{tpu_custom_call.1} parent=1 // pred_fallthru
      _
    // Predicated region
    $region14: #{tpu_custom_call.1} parent=1 // pred_check
      _
    $region15: #{tpu_custom_call.1} parent=1 // pred_check_branch
      %30 = sbr.rel (0) target = $region17
    $region16: #{tpu_custom_call.1} parent=1 // pred_region
      _
    $region17: #{tpu_custom_call.1} parent=1 // pred_fallthru
      _
    // Predicated region
    $region18: #{tpu_custom_call.1} parent=1 // pred_check
      _
    $region19: #{tpu_custom_call.1} parent=1 // pred_check_branch
      %32 = sbr.rel (0) target = $region21
    $region20: #{tpu_custom_call.1} parent=1 // pred_region
      _
    $region21: #{tpu_custom_call.1} parent=1 // pred_fallthru
      _
    // Predicated region
    $region22: #{tpu_custom_call.1} parent=1 // pred_check
      _
    $region23: #{tpu_custom_call.1} parent=1 // pred_check_branch
      %34 = sbr.rel (0) target = $region25
    $region24: #{tpu_custom_call.1} parent=1 // pred_region
      _
    $region25: #{tpu_custom_call.1} parent=1 // pred_fallthru
      _
    // Predicated region
    $region26: #{tpu_custom_call.1} parent=1 // pred_check
      _
    $region27: #{tpu_custom_call.1} parent=1 // pred_check_branch
      %36 = sbr.rel (0) target = $region29
    $region28: #{tpu_custom_call.1} parent=1 // pred_region
      _
    $region29: #{tpu_custom_call.1} parent=1 // pred_fallthru
      _
    // Predicated region
    $region30: #{tpu_custom_call.1} parent=1 // pred_check
      _
    $region31: #{tpu_custom_call.1} parent=1 // pred_check_branch
      %38 = sbr.rel (0) target = $region33
    $region32: #{tpu_custom_call.1} parent=1 // pred_region
      %39 = dma.done [#allocation3], 256
    $region33: #{tpu_custom_call.1} parent=1 // pred_fallthru
      _
    %v41 = vld [vmem:[%s0] sm:$0xff]
    %v42 = vld [vmem:[%s0 + $0x8] sm:$0xff]
    %v43 = vpack.c.bf16 %v42, %v41
    %v44 = vld [vmem:[#allocation2] sm:$0xf]
    %v45 = vld [vmem:[#allocation2 + $0x4] sm:$0xf]
    %v46 = vld [vmem:[#allocation2 + $0x8] sm:$0xf]
    %v47 = vld [vmem:[#allocation2 + $0xc] sm:$0xf]
    %v48 = vld [vmem:[%s2] sm:$0x1]
    %v50 = vlaneseq
    %v51 = vshrl.u32 %v50, 7
    %v52 = vsub.s32 0, %v51
    %v53 = vrot.slane %v48, %v52
    %v59 = vunpack.c.l.b16 %v44
    %v60 = vunpack.c.l.b16 %v45
    %v61 = vunpack.c.l.b16 %v46
    %v62 = vunpack.c.l.b16 %v47
    %v63 = vpack.c.b16 %v60, %v59
    %v64 = vpack.c.b16 %v62, %v61
    %vm67 = vcmask 261120
    %v69 = vsel %vm67, %v43, 0
    %71 = vmatprep.subr.bf16.mxu0 0
    %72 = vmatpush1.bf16.msra.mxu0 %v63
    %73 = vmatprep.subr.bf16.mxu0 0
    %74 = vmatpush1.bf16.msra.mxu0 %v64
    %75 = vmatprep.subr.bf16.mxu0 0
    %76 = vmatpush1.bf16.msra.mxu0 0
    %77 = vmatprep.subr.bf16.mxu0 0
    %78 = vmatpush1.bf16.msra.mxu0 0
    %79 = vmatprep.subr.bf16.mxu0 0
    %80 = vmatpush1.bf16.msra.mxu0 0
    %81 = vmatprep.subr.bf16.mxu0 0
    %82 = vmatpush1.bf16.msra.mxu0 0
    %83 = vmatprep.subr.bf16.mxu0 0
    %84 = vmatpush1.bf16.msra.mxu0 0
    %85 = vmatprep.subr.bf16.mxu0 0
    %86 = vmatpush1.bf16.msra.mxu0 0
    %87 = vmatprep.subr.bf16.mxu0 0
    %88 = vmatpush1.bf16.msra.mxu0 0
    %89 = vmatprep.subr.bf16.mxu0 0
    %90 = vmatpush1.bf16.msra.mxu0 0
    %91 = vmatprep.subr.bf16.mxu0 0
    %92 = vmatpush1.bf16.msra.mxu0 0
    %93 = vmatprep.subr.bf16.mxu0 0
    %94 = vmatpush1.bf16.msra.mxu0 0
    %95 = vmatprep.subr.bf16.mxu0 0
    %96 = vmatpush1.bf16.msra.mxu0 0
    %97 = vmatprep.subr.bf16.mxu0 0
    %98 = vmatpush1.bf16.msra.mxu0 0
    %99 = vmatprep.subr.bf16.mxu0 0
    %100 = vmatpush1.bf16.msra.mxu0 0
    %101 = vmatprep.subr.bf16.mxu0 0
    %102 = vmatpush1.bf16.msra.mxu0 0
    %103 = vmatprep.mubr.bf16.mxu0 0
    %104 = vmatmul.mubr.bf16.gmra.mrb[0].mxu0 %v69
    %v105 = vpop.f32.mrb[0].mxu0
    %v106 = vadd.f32 %v53, %v105
    %v107 = vpop.f32.mrb[0].mxu0
    %v108 = vpop.f32.mrb[0].mxu0
    %v109 = vadd.f32 %v53, %v108
    %v110 = vpop.f32.mrb[0].mxu0
    %111 = vdwg.mxu0
    %v112 = vmax.f32 %v106, 0.0
    %v113 = vmax.f32 %v109, 0.0
    %v114 = vpack.c.bf16 %v113, %v112
    %v115 = vld [vmem:[%s3] sm:$0xf]
    %v116 = vld [vmem:[%s3 + $0x4] sm:$0xf]
    %v117 = vld [vmem:[%s3 + $0x8] sm:$0xf]
    %v118 = vld [vmem:[%s3 + $0xc] sm:$0xf]
    %v119 = vld [vmem:[%s3 + $0x10] sm:$0xf]
    %v120 = vld [vmem:[%s3 + $0x14] sm:$0xf]
    %v121 = vld [vmem:[%s3 + $0x18] sm:$0xf]
    %v122 = vld [vmem:[%s3 + $0x1c] sm:$0xf]
    %v123 = vld [vmem:[%s3 + $0x20] sm:$0xf]
    %v124 = vld [vmem:[%s3 + $0x24] sm:$0xf]
    %v125 = vld [vmem:[%s3 + $0x28] sm:$0xf]
    %v126 = vld [vmem:[%s3 + $0x2c] sm:$0xf]
    %v127 = vld [vmem:[%s3 + $0x30] sm:$0xf]
    %v128 = vld [vmem:[%s3 + $0x34] sm:$0xf]
    %v129 = vld [vmem:[%s3 + $0x38] sm:$0xf]
    %v130 = vld [vmem:[%s3 + $0x3c] sm:$0xf]
    %v131 = vld [vmem:[%s4] sm:$0x1]
    %v133 = vlaneseq
    %v134 = vshrl.u32 %v133, 7
    %v135 = vsub.s32 0, %v134
    %v136 = vrot.slane %v131, %v135
    %v154 = vunpack.c.l.b16 %v115
    %v155 = vunpack.c.l.b16 %v116
    %v156 = vunpack.c.l.b16 %v117
    %v157 = vunpack.c.l.b16 %v118
    %v158 = vunpack.c.l.b16 %v119
    %v159 = vunpack.c.l.b16 %v120
    %v160 = vunpack.c.l.b16 %v121
    %v161 = vunpack.c.l.b16 %v122
    %v162 = vunpack.c.l.b16 %v123
    %v163 = vunpack.c.l.b16 %v124
    %v164 = vunpack.c.l.b16 %v125
    %v165 = vunpack.c.l.b16 %v126
    %v166 = vunpack.c.l.b16 %v127
    %v167 = vunpack.c.l.b16 %v128
    %v168 = vunpack.c.l.b16 %v129
    %v169 = vunpack.c.l.b16 %v130
    %v170 = vpack.c.b16 %v155, %v154
    %v171 = vpack.c.b16 %v157, %v156
    %v172 = vpack.c.b16 %v159, %v158
    %v173 = vpack.c.b16 %v161, %v160
    %v174 = vpack.c.b16 %v163, %v162
    %v175 = vpack.c.b16 %v165, %v164
    %v176 = vpack.c.b16 %v167, %v166
    %v177 = vpack.c.b16 %v169, %v168
    %186 = vmatprep.subr.bf16.mxu0 0
    %187 = vmatpush1.bf16.msra.mxu0 %v170
    %188 = vmatprep.subr.bf16.mxu0 0
    %189 = vmatpush1.bf16.msra.mxu0 %v171
    %190 = vmatprep.subr.bf16.mxu0 0
    %191 = vmatpush1.bf16.msra.mxu0 %v172
    %192 = vmatprep.subr.bf16.mxu0 0
    %193 = vmatpush1.bf16.msra.mxu0 %v173
    %194 = vmatprep.subr.bf16.mxu0 0
    %195 = vmatpush1.bf16.msra.mxu0 %v174
    %196 = vmatprep.subr.bf16.mxu0 0
    %197 = vmatpush1.bf16.msra.mxu0 %v175
    %198 = vmatprep.subr.bf16.mxu0 0
    %199 = vmatpush1.bf16.msra.mxu0 %v176
    %200 = vmatprep.subr.bf16.mxu0 0
    %201 = vmatpush1.bf16.msra.mxu0 %v177
    %202 = vmatprep.subr.bf16.mxu0 0
    %203 = vmatpush1.bf16.msra.mxu0 0
    %204 = vmatprep.subr.bf16.mxu0 0
    %205 = vmatpush1.bf16.msra.mxu0 0
    %206 = vmatprep.subr.bf16.mxu0 0
    %207 = vmatpush1.bf16.msra.mxu0 0
    %208 = vmatprep.subr.bf16.mxu0 0
    %209 = vmatpush1.bf16.msra.mxu0 0
    %210 = vmatprep.subr.bf16.mxu0 0
    %211 = vmatpush1.bf16.msra.mxu0 0
    %212 = vmatprep.subr.bf16.mxu0 0
    %213 = vmatpush1.bf16.msra.mxu0 0
    %214 = vmatprep.subr.bf16.mxu0 0
    %215 = vmatpush1.bf16.msra.mxu0 0
    %216 = vmatprep.subr.bf16.mxu0 0
    %217 = vmatpush1.bf16.msra.mxu0 0
    %218 = vmatprep.mubr.bf16.mxu0 0
    %219 = vmatmul.mubr.bf16.gmra.mrb[0].mxu0 %v114
    %v220 = vpop.f32.mrb[0].mxu0
    %v221 = vadd.f32 %v136, %v220
    %v222 = vpop.f32.mrb[0].mxu0
    %v223 = vpop.f32.mrb[0].mxu0
    %v224 = vadd.f32 %v136, %v223
    %v225 = vpop.f32.mrb[0].mxu0
    %226 = vdwg.mxu0
    %v227 = vmax.f32 %v221, 0.0
    %v228 = vmax.f32 %v224, 0.0
    %v229 = vpack.c.bf16 %v228, %v227
    %v230 = vld [vmem:[%s5] sm:$0xf]
    %v231 = vld [vmem:[%s5 + $0x4] sm:$0xf]
    %v232 = vld [vmem:[%s5 + $0x8] sm:$0xf]
    %v233 = vld [vmem:[%s5 + $0xc] sm:$0xf]
    %v234 = vld [vmem:[%s5 + $0x10] sm:$0xf]
    %v235 = vld [vmem:[%s5 + $0x14] sm:$0xf]
    %v236 = vld [vmem:[%s5 + $0x18] sm:$0xf]
    %v237 = vld [vmem:[%s5 + $0x1c] sm:$0xf]
    %v238 = vld [vmem:[%s5 + $0x20] sm:$0xf]
    %v239 = vld [vmem:[%s5 + $0x24] sm:$0xf]
    %v240 = vld [vmem:[%s5 + $0x28] sm:$0xf]
    %v241 = vld [vmem:[%s5 + $0x2c] sm:$0xf]
    %v242 = vld [vmem:[%s5 + $0x30] sm:$0xf]
    %v243 = vld [vmem:[%s5 + $0x34] sm:$0xf]
    %v244 = vld [vmem:[%s5 + $0x38] sm:$0xf]
    %v245 = vld [vmem:[%s5 + $0x3c] sm:$0xf]
    %v246 = vld [vmem:[%s6] sm:$0x1]
    %v248 = vlaneseq
    %v249 = vshrl.u32 %v248, 7
    %v250 = vsub.s32 0, %v249
    %v251 = vrot.slane %v246, %v250
    %v269 = vunpack.c.l.b16 %v230
    %v270 = vunpack.c.l.b16 %v231
    %v271 = vunpack.c.l.b16 %v232
    %v272 = vunpack.c.l.b16 %v233
    %v273 = vunpack.c.l.b16 %v234
    %v274 = vunpack.c.l.b16 %v235
    %v275 = vunpack.c.l.b16 %v236
    %v276 = vunpack.c.l.b16 %v237
    %v277 = vunpack.c.l.b16 %v238
    %v278 = vunpack.c.l.b16 %v239
    %v279 = vunpack.c.l.b16 %v240
    %v280 = vunpack.c.l.b16 %v241
    %v281 = vunpack.c.l.b16 %v242
    %v282 = vunpack.c.l.b16 %v243
    %v283 = vunpack.c.l.b16 %v244
    %v284 = vunpack.c.l.b16 %v245
    %v285 = vpack.c.b16 %v270, %v269
    %v286 = vpack.c.b16 %v272, %v271
    %v287 = vpack.c.b16 %v274, %v273
    %v288 = vpack.c.b16 %v276, %v275
    %v289 = vpack.c.b16 %v278, %v277
    %v290 = vpack.c.b16 %v280, %v279
    %v291 = vpack.c.b16 %v282, %v281
    %v292 = vpack.c.b16 %v284, %v283
    %301 = vmatprep.subr.bf16.mxu0 0
    %302 = vmatpush1.bf16.msra.mxu0 %v285
    %303 = vmatprep.subr.bf16.mxu0 0
    %304 = vmatpush1.bf16.msra.mxu0 %v286
    %305 = vmatprep.subr.bf16.mxu0 0
    %306 = vmatpush1.bf16.msra.mxu0 %v287
    %307 = vmatprep.subr.bf16.mxu0 0
    %308 = vmatpush1.bf16.msra.mxu0 %v288
    %309 = vmatprep.subr.bf16.mxu0 0
    %310 = vmatpush1.bf16.msra.mxu0 %v289
    %311 = vmatprep.subr.bf16.mxu0 0
    %312 = vmatpush1.bf16.msra.mxu0 %v290
    %313 = vmatprep.subr.bf16.mxu0 0
    %314 = vmatpush1.bf16.msra.mxu0 %v291
    %315 = vmatprep.subr.bf16.mxu0 0
    %316 = vmatpush1.bf16.msra.mxu0 %v292
    %317 = vmatprep.subr.bf16.mxu0 0
    %318 = vmatpush1.bf16.msra.mxu0 0
    %319 = vmatprep.subr.bf16.mxu0 0
    %320 = vmatpush1.bf16.msra.mxu0 0
    %321 = vmatprep.subr.bf16.mxu0 0
    %322 = vmatpush1.bf16.msra.mxu0 0
    %323 = vmatprep.subr.bf16.mxu0 0
    %324 = vmatpush1.bf16.msra.mxu0 0
    %325 = vmatprep.subr.bf16.mxu0 0
    %326 = vmatpush1.bf16.msra.mxu0 0
    %327 = vmatprep.subr.bf16.mxu0 0
    %328 = vmatpush1.bf16.msra.mxu0 0
    %329 = vmatprep.subr.bf16.mxu0 0
    %330 = vmatpush1.bf16.msra.mxu0 0
    %331 = vmatprep.subr.bf16.mxu0 0
    %332 = vmatpush1.bf16.msra.mxu0 0
    %333 = vmatprep.mubr.bf16.mxu0 0
    %334 = vmatmul.mubr.bf16.gmra.mrb[0].mxu0 %v229
    %v335 = vpop.f32.mrb[0].mxu0
    %v336 = vadd.f32 %v251, %v335
    %v337 = vpop.f32.mrb[0].mxu0
    %v338 = vpop.f32.mrb[0].mxu0
    %v339 = vadd.f32 %v251, %v338
    %v340 = vpop.f32.mrb[0].mxu0
    %341 = vdwg.mxu0
    %vm342 = vcmask 31744
    %343 = vst.msk [vmem:[#allocation4] sm:$0xff] %vm342, %v336
    %344 = vst.msk [vmem:[#allocation4 + $0x8] sm:$0xff] %vm342, %v339
    // Predicated region
    $region34: #{tpu_custom_call.1} parent=1 // pred_check
      _
    $region35: #{tpu_custom_call.1} parent=1 // pred_check_branch
      %346 = sbr.rel (0) target = $region37
    $region36: #{tpu_custom_call.1} parent=1 // pred_region
      // Predicated region
      $region38: #{tpu_custom_call.1} parent=36 // pred_check
        _
      $region39: #{tpu_custom_call.1} parent=36 // pred_check_branch
        %348 = sbr.rel (0) target = $region41
      $region40: #{tpu_custom_call.1} parent=36 // pred_region
        // Predicated region
        $region42: #{tpu_custom_call.1} parent=40 // pred_check
          _
        $region43: #{tpu_custom_call.1} parent=40 // pred_check_branch
          %350 = sbr.rel (0) target = $region45
        $region44: #{tpu_custom_call.1} parent=40 // pred_region
          // Predicated region
          $region57: #{tpu_custom_call.1} parent=44 // pred_check
            _
          $region58: #{tpu_custom_call.1} parent=44 // pred_check_branch
            %365 = sbr.rel (0) target = $region60
          $region59: #{tpu_custom_call.1} parent=44 // pred_region
            loop: start=0, step=1, limit=1
            $region61: #{tpu_custom_call.1} parent=59 // loop_pre_header
              _
            $region62: #{tpu_custom_call.1} parent=59 // loop_header
              %s367 = sphi 0, %s371
              %p368 = scmp.ge.s32.totalorder %s367, 1
              %s372 = sphi [#allocation4], [#allocation4]
              %s373 = sphi %s7, %s7
            $region63: #{tpu_custom_call.1} parent=59 // loop_header_branch
              %370 = sbr.rel (%p368) target = $region67
            $region64: #{tpu_custom_call.1} parent=59 // loop_body
              %v374 = vld [vmem:[%s372] sm:$0xff]
              %375 = vst [vmem:[%s373] sm:$0xff] %v374
            $region65: #{tpu_custom_call.1} parent=59 // loop_footer
              %s371 = sadd.s32 1, %s367
            $region66: #{tpu_custom_call.1} parent=59 // loop_footer_branch
              %366 = sbr.rel target = $region62
            $region67: #{tpu_custom_call.1} parent=59 // loop_exit
              _
          $region60: #{tpu_custom_call.1} parent=44 // pred_fallthru
            _
          // Predicated region
          $region68: #{tpu_custom_call.1} parent=44 // pred_check
            _
          $region69: #{tpu_custom_call.1} parent=44 // pred_check_branch
            %377 = sbr.rel target = $region71
          $region70: #{tpu_custom_call.1} parent=44 // pred_region
            _
          $region71: #{tpu_custom_call.1} parent=44 // pred_fallthru
            _
        $region45: #{tpu_custom_call.1} parent=40 // pred_fallthru
          _
        // Predicated region
        $region46: #{tpu_custom_call.1} parent=40 // pred_check
          _
        $region47: #{tpu_custom_call.1} parent=40 // pred_check_branch
          %352 = sbr.rel target = $region49
        $region48: #{tpu_custom_call.1} parent=40 // pred_region
          loop: start=0, step=1, limit=1
          $region50: #{tpu_custom_call.1} parent=48 // loop_pre_header
            _
          $region51: #{tpu_custom_call.1} parent=48 // loop_header
            %s355 = sphi 0, %s359
            %p356 = scmp.ge.s32.totalorder %s355, 1
            %s360 = sphi [#allocation4], [#allocation4]
            %s361 = sphi %s7, %s7
          $region52: #{tpu_custom_call.1} parent=48 // loop_header_branch
            %358 = sbr.rel (%p356) target = $region56
          $region53: #{tpu_custom_call.1} parent=48 // loop_body
            %v362 = vld [vmem:[%s360] sm:$0xff]
            %363 = vst [vmem:[%s361] sm:$0xff] %v362
          $region54: #{tpu_custom_call.1} parent=48 // loop_footer
            %s359 = sadd.s32 1, %s355
          $region55: #{tpu_custom_call.1} parent=48 // loop_footer_branch
            %354 = sbr.rel target = $region51
          $region56: #{tpu_custom_call.1} parent=48 // loop_exit
            _
        $region49: #{tpu_custom_call.1} parent=40 // pred_fallthru
          _
      $region41: #{tpu_custom_call.1} parent=36 // pred_fallthru
        _
      %378 = vnop
    $region37: #{tpu_custom_call.1} parent=1 // pred_fallthru
      _
    // Predicated region
    $region72: #{tpu_custom_call.1} parent=1 // pred_check
      _
    $region73: #{tpu_custom_call.1} parent=1 // pred_check_branch
      %380 = sbr.rel (0) target = $region75
    $region74: #{tpu_custom_call.1} parent=1 // pred_region
      _
    $region75: #{tpu_custom_call.1} parent=1 // pred_fallthru
      _
    %381 = vsyncpa [#allocation3], 1

</llo_original>
